<compile_context>
chip_gen: v7x
topology: tpu7x:2x2x1
jax: 0.10.0
libtpu: 0.0.40
codegen_flags: <defaults>
</compile_context>

<pallas_src>
import functools

import jax
import jax.numpy as jnp
from jax import lax
from jax.experimental import pallas as pl
from jax.experimental.pallas import tpu as pltpu


# ------------------------------- Pallas kernel -------------------------------

def _downconv_kernel(xm_ref, xh_ref, w_ref, b_ref, o_ref, *, TH, Wh, Wout, Cout, K4):
    """One (batch, output-row-tile) step of the 4x4/stride-2 conv.

    xm_ref : (1, TH, Wh, K4)      bf16  main input rows [r*TH, r*TH + TH)
    xh_ref : (1, 1,  Wh, K4)      bf16  halo input row   r*TH + TH
    w_ref  : (K4, 4*Cout)         bf16  tap-concatenated weights
    b_ref  : (1, 1, Cout)         f32   bias
    o_ref  : (1, TH, Wout, Cout)  f32   output tile
    """
    NC = 4 * Cout
    xm = xm_ref[...].reshape(TH * Wh, K4)
    xh = xh_ref[...].reshape(Wh, K4)
    w = w_ref[...]

    # One wide (N = 4*Cout = 128) MXU matmul per block; f32 accumulation in registers
    # (no VMEM accumulator scratch).  The 1-row halo gets its own small matmul.
    zm = jnp.dot(xm, w, preferred_element_type=jnp.float32).reshape(TH, Wh, NC)
    zh = jnp.dot(xh, w, preferred_element_type=jnp.float32).reshape(1, Wh, NC)
    z = jnp.concatenate([zm, zh], axis=0)                      # (TH+1, Wh, 4*Cout) f32

    # 4 cheap shifted adds over the small f32 result reduce the (dy, dx) taps;
    # bias is fused into the same add chain.
    c = Cout
    y = (z[:TH, :Wout, 0 * c:1 * c]
         + z[:TH, 1:, 1 * c:2 * c]
         + z[1:, :Wout, 2 * c:3 * c]
         + z[1:, 1:, 3 * c:4 * c]
         + b_ref[...])
    o_ref[0] = y.astype(o_ref.dtype)


# ------------------------------ tiling helpers --------------------------------

def _vmem_capacity_bytes():
    """Per-TensorCore VMEM capacity (64 MiB on v7x, 128 MiB on v5e/v6e)."""
    try:
        cap = getattr(pltpu.get_tpu_info(), "vmem_capacity_bytes", None)
        if cap:
            return int(cap)
    except Exception:
        pass
    return 64 * 1024 * 1024          # conservative fallback (v7x per-core VMEM)


def _pick_row_tile(hout, wh, k4, cout, row_tile_max, budget_bytes):
    """Output-row tile height TH: largest value whose per-step footprint
    (double-buffered blocks + in-kernel f32 temporaries) fits the budget,
    then balanced so all tiles are (nearly) equal.  No divisibility requirement."""
    nc = 4 * cout
    fixed = (2 * wh * k4 * 2             # halo row, double-buffered bf16
             + 2 * k4 * nc * 2           # tap-concatenated weights (db alloc)
             + 4 * wh * nc * 4           # halo matmul result + epilogue slack
             + (2 << 20))                # Mosaic internal scratch slack
    per_row = (2 * wh * k4 * 2           # main input rows, double-buffered bf16
               + 2 * (wh - 1) * cout * 4  # output rows, double-buffered f32
               + 3 * wh * nc * 4)        # z / concat / shifted-add f32 temporaries
    th = max(1, (budget_bytes - fixed) // per_row)
    th = int(min(th, hout))
    if row_tile_max is not None:
        th = max(1, min(th, int(row_tile_max)))
    n_tiles = pl.cdiv(hout, th)
    th = pl.cdiv(hout, n_tiles)          # balance: same step count, smaller tail pad
    n_tiles = pl.cdiv(hout, th)
    return int(th), int(n_tiles)


# --------------------------------- wrapper ------------------------------------

def downconv(x_nchw, w_oihw, bias, *, row_tile_max=None):
    """Conv2d(kernel=4, stride=2, padding=0, bias=True) forward.  NCHW in/out, f32."""
    B, Cin, H, W = x_nchw.shape
    Cout, Cin_w, kh, kw = w_oihw.shape
    assert (kh, kw) == (4, 4) and Cin_w == Cin
    assert H >= 4 and W >= 4 and H % 2 == 0 and W % 2 == 0, \
        "space-to-depth path needs even spatial dims"
    Hh, Wh = H // 2, W // 2
    Hout, Wout = Hh - 1, Wh - 1
    K4, NC = 4 * Cin, 4 * Cout

    cap = _vmem_capacity_bytes()
    TH, n_tiles = _pick_row_tile(Hout, Wh, K4, Cout, row_tile_max,
                                 budget_bytes=int(0.55 * cap))
    Hout_pad = n_tiles * TH
    Hh_pad = Hout_pad + 1

    # Host prep (one fused XLA pass): NCHW f32 -> space-to-depth NHWC bf16 (+ row pad).
    #   x_s2d[b, i, j, (py*2+px)*Cin + c] = x[b, c, 2i+py, 2j+px]
    x_s2d = jnp.transpose(x_nchw.reshape(B, Cin, Hh, 2, Wh, 2),
                          (0, 2, 4, 3, 5, 1)).reshape(B, Hh, Wh, K4)
    x_s2d = x_s2d.astype(jnp.bfloat16)
    if Hh_pad > Hh:                      # zero rows feed only discarded output rows
        x_s2d = jnp.pad(x_s2d, ((0, 0), (0, Hh_pad - Hh), (0, 0), (0, 0)))

    # Weights OIHW -> tap-concatenated (K4, 4*Cout) bf16:
    #   wcat[(py*2+px)*Cin + c, (2*dy+dx)*Cout + co] = w[co, c, 2*dy+py, 2*dx+px]
    w2 = jnp.transpose(w_oihw, (2, 3, 1, 0)).reshape(2, 2, 2, 2, Cin, Cout)  # (dy,py,dx,px,c,co)
    w2 = jnp.transpose(w2, (0, 2, 1, 3, 4, 5)).reshape(4, K4, Cout)          # (tap, k4, co)
    wcat = jnp.transpose(w2, (1, 0, 2)).reshape(K4, NC).astype(jnp.bfloat16)
    b3 = bias.reshape(1, 1, Cout).astype(jnp.float32)

    # Generation-aware scoped-VMEM limit with headroom over the estimated footprint.
    need = (2 * TH * Wh * K4 * 2 + 2 * Wh * K4 * 2 + 2 * K4 * NC * 2
            + 2 * TH * Wout * Cout * 4 + 3 * (TH + 1) * Wh * NC * 4)
    vmem_limit = int(min(0.9 * cap, max(32 * 1024 * 1024, 2 * need)))

    kern = functools.partial(_downconv_kernel, TH=TH, Wh=Wh, Wout=Wout,
                             Cout=Cout, K4=K4)

    y_pad = pl.pallas_call(
        kern,
        out_shape=jax.ShapeDtypeStruct((B, Hout_pad, Wout, Cout), jnp.float32),
        grid=(B, n_tiles),
        in_specs=[
            # main TH-row slab for output rows [r*TH, r*TH + TH)
            pl.BlockSpec((1, TH, Wh, K4), lambda b, r: (b, r, 0, 0)),
            # 1-row halo below the slab (block size 1 => block index == row index)
            pl.BlockSpec((1, 1, Wh, K4), lambda b, r: (b, (r + 1) * TH, 0, 0)),
            pl.BlockSpec((K4, NC), lambda b, r: (0, 0)),          # resident weights
            pl.BlockSpec((1, 1, Cout), lambda b, r: (0, 0, 0)),   # resident bias
        ],
        out_specs=pl.BlockSpec((1, TH, Wout, Cout), lambda b, r: (b, r, 0, 0)),
        compiler_params=pltpu.CompilerParams(
            dimension_semantics=("parallel", "parallel"),   # no carried state =>
            vmem_limit_bytes=vmem_limit,                    # both axes core-shardable
        ),
    )(x_s2d, x_s2d, wcat, b3)

    y = y_pad[:, :Hout]                          # drop padded tail rows
    return jnp.transpose(y, (0, 3, 1, 2))        # NHWC -> NCHW (smallest tensor)


# ----------------------------------- demo ------------------------------------

if __name__ == "__main__":
    key = jax.random.PRNGKey(0)
    kx, kw, kb = jax.random.split(key, 3)
    B, IN_CH, OUT_CH, S = 2, 64, 32, 32          # module defaults: Conv2d(64, 32, 4, 2)
    x = jax.random.normal(kx, (B, IN_CH, S, S), jnp.float32)
    w = 0.05 * jax.random.normal(kw, (OUT_CH, IN_CH, 4, 4), jnp.float32)
    b = 0.05 * jax.random.normal(kb, (OUT_CH,), jnp.float32)

    Hout = (S - 4) // 2 + 1
    ref = lax.conv_general_dilated(
        x, w, window_strides=(2, 2), padding="VALID",
        dimension_numbers=("NCHW", "OIHW", "NCHW")) + b.reshape(1, -1, 1, 1)

    # 1) forced small row tile: Hout=15, TH=4 -> 4 row tiles with a padded tail row
    #    (exercises the multi-tile + cdiv/padding path and the halo BlockSpec).
    out = jax.jit(functools.partial(downconv, row_tile_max=4))(x, w, b)
    jax.block_until_ready(out)
    assert out.shape == (B, OUT_CH, Hout, Hout), out.shape
    assert bool(jnp.all(jnp.isfinite(out)))
    assert bool(jnp.allclose(out, ref, rtol=5e-2, atol=5e-2)), \
        float(jnp.max(jnp.abs(out - ref)))

    # 2) auto row tile from the VMEM budget (single tile at this size).
    out2 = jax.jit(downconv)(x, w, b)
    jax.block_until_ready(out2)
    assert out2.shape == (B, OUT_CH, Hout, Hout), out2.shape
    assert bool(jnp.allclose(out2, ref, rtol=5e-2, atol=5e-2)), \
        float(jnp.max(jnp.abs(out2 - ref)))

    print("KERNEL_OK")
</pallas_src>

<mosaic_0001>
module attributes {stable_mosaic.version = 11 : i64} {
  func.func @_downconv_kernel(%arg0: i32, %arg1: i32, %arg2: memref<1x4x16x256xbf16, #tpu.memory_space<vmem>>, %arg3: memref<1x1x16x256xbf16, #tpu.memory_space<vmem>>, %arg4: memref<256x128xbf16, #tpu.memory_space<vmem>>, %arg5: memref<1x1x32xf32, #tpu.memory_space<vmem>>, %arg6: memref<1x4x15x32xf32, #tpu.memory_space<vmem>>) attributes {dimension_semantics = [#tpu.dimension_semantics<parallel>, #tpu.dimension_semantics<parallel>], iteration_bounds = array<i64: 2, 4>, scalar_prefetch = 0 : i64, scratch_operands = 0 : i64, tpu.core_type = #tpu.core_type<tc>, window_params = [{transform_indices = @transform_0, window_bounds = array<i64: 1, 4, 16, 256>}, {transform_indices = @transform_1, window_bounds = array<i64: 1, 1, 16, 256>}, {pipeline_mode = #tpu.pipeline_mode<synchronous>, transform_indices = @transform_2, window_bounds = array<i64: 256, 128>}, {pipeline_mode = #tpu.pipeline_mode<synchronous>, transform_indices = @transform_3, window_bounds = array<i64: 1, 1, 32>}, {transform_indices = @transform_4, window_bounds = array<i64: 1, 4, 15, 32>}]} {
    %c0 = arith.constant 0 : index
    %c0_0 = arith.constant 0 : index
    %c0_1 = arith.constant 0 : index
    %c0_2 = arith.constant 0 : index
    %0 = vector.load %arg2[%c0, %c0_0, %c0_1, %c0_2] : memref<1x4x16x256xbf16, #tpu.memory_space<vmem>>, vector<1x4x16x256xbf16>
    %1 = vector.shape_cast %0 : vector<1x4x16x256xbf16> to vector<64x256xbf16>
    %c0_3 = arith.constant 0 : index
    %c0_4 = arith.constant 0 : index
    %c0_5 = arith.constant 0 : index
    %c0_6 = arith.constant 0 : index
    %2 = vector.load %arg3[%c0_3, %c0_4, %c0_5, %c0_6] : memref<1x1x16x256xbf16, #tpu.memory_space<vmem>>, vector<1x1x16x256xbf16>
    %3 = vector.shape_cast %2 : vector<1x1x16x256xbf16> to vector<16x256xbf16>
    %c0_7 = arith.constant 0 : index
    %c0_8 = arith.constant 0 : index
    %4 = vector.load %arg4[%c0_7, %c0_8] : memref<256x128xbf16, #tpu.memory_space<vmem>>, vector<256x128xbf16>
    %cst = arith.constant dense<0.000000e+00> : vector<64x128xf32>
    %5 = tpu.matmul %1, %4, %cst {dimension_numbers = #tpu.dot_dimension_numbers<[1], [0], [0], [1], [0, 0, 1, 1], [], []>} : vector<64x256xbf16>, vector<256x128xbf16>, vector<64x128xf32> -> vector<64x128xf32>
    %6 = vector.shape_cast %5 : vector<64x128xf32> to vector<4x16x128xf32>
    %cst_9 = arith.constant dense<0.000000e+00> : vector<16x128xf32>
    %7 = tpu.matmul %3, %4, %cst_9 {dimension_numbers = #tpu.dot_dimension_numbers<[1], [0], [0], [1], [0, 0, 1, 1], [], []>} : vector<16x256xbf16>, vector<256x128xbf16>, vector<16x128xf32> -> vector<16x128xf32>
    %8 = vector.shape_cast %7 : vector<16x128xf32> to vector<1x16x128xf32>
    %9 = tpu.concatenate %6, %8 in 0 : vector<4x16x128xf32>, vector<1x16x128xf32> -> vector<5x16x128xf32>
    %10 = vector.extract_strided_slice %9 {offsets = [0, 0, 0], sizes = [4, 15, 32], strides = [1, 1, 1]} : vector<5x16x128xf32> to vector<4x15x32xf32>
    %11 = vector.extract_strided_slice %9 {offsets = [0, 1, 32], sizes = [4, 15, 32], strides = [1, 1, 1]} : vector<5x16x128xf32> to vector<4x15x32xf32>
    %12 = arith.addf %10, %11 : vector<4x15x32xf32>
    %13 = vector.extract_strided_slice %9 {offsets = [1, 0, 64], sizes = [4, 15, 32], strides = [1, 1, 1]} : vector<5x16x128xf32> to vector<4x15x32xf32>
    %14 = arith.addf %12, %13 : vector<4x15x32xf32>
    %15 = vector.extract_strided_slice %9 {offsets = [1, 1, 96], sizes = [4, 15, 32], strides = [1, 1, 1]} : vector<5x16x128xf32> to vector<4x15x32xf32>
    %16 = arith.addf %14, %15 : vector<4x15x32xf32>
    %c0_10 = arith.constant 0 : index
    %c0_11 = arith.constant 0 : index
    %c0_12 = arith.constant 0 : index
    %17 = vector.load %arg5[%c0_10, %c0_11, %c0_12] : memref<1x1x32xf32, #tpu.memory_space<vmem>>, vector<1x1x32xf32>
    %18 = vector.broadcast %17 : vector<1x1x32xf32> to vector<4x15x32xf32>
    %19 = arith.addf %16, %18 : vector<4x15x32xf32>
    %c0_13 = arith.constant 0 : index
    %c0_14 = arith.constant 0 : index
    %c0_15 = arith.constant 0 : index
    %c0_16 = arith.constant 0 : index
    %20 = vector.load %arg6[%c0_13, %c0_14, %c0_15, %c0_16] : memref<1x4x15x32xf32, #tpu.memory_space<vmem>>, vector<1x4x15x32xf32>
    %21 = vector.shape_cast %20 : vector<1x4x15x32xf32> to vector<4x15x32xf32>
    %22 = vector.shape_cast %19 : vector<4x15x32xf32> to vector<1x4x15x32xf32>
    tpu.vector_store %arg6[%c0_13, %c0_14, %c0_15, %c0_16], %22 {strides = array<i32>} : memref<1x4x15x32xf32, #tpu.memory_space<vmem>>, vector<1x4x15x32xf32>,
    return
  }
  func.func @transform_0(%arg0: i32, %arg1: i32) -> (i32, i32, i32, i32) {
    %c0_i32 = arith.constant 0 : i32
    %c0_i32_0 = arith.constant 0 : i32
    %c0_i32_1 = arith.constant 0 : i32
    return %arg0, %arg1, %c0_i32, %c0_i32_0 : i32, i32, i32, i32
  }
  func.func @transform_1(%arg0: i32, %arg1: i32) -> (i32, i32, i32, i32) {
    %c1_i32 = arith.constant 1 : i32
    %0 = arith.addi %arg1, %c1_i32 : i32
    %c4_i32 = arith.constant 4 : i32
    %1 = arith.muli %0, %c4_i32 : i32
    %c0_i32 = arith.constant 0 : i32
    %c0_i32_0 = arith.constant 0 : i32
    %c0_i32_1 = arith.constant 0 : i32
    return %arg0, %1, %c0_i32, %c0_i32_0 : i32, i32, i32, i32
  }
  func.func @transform_2(%arg0: i32, %arg1: i32) -> (i32, i32) {
    %c0_i32 = arith.constant 0 : i32
    %c0_i32_0 = arith.constant 0 : i32
    %c0_i32_1 = arith.constant 0 : i32
    return %c0_i32, %c0_i32_0 : i32, i32
  }
  func.func @transform_3(%arg0: i32, %arg1: i32) -> (i32, i32, i32) {
    %c0_i32 = arith.constant 0 : i32
    %c0_i32_0 = arith.constant 0 : i32
    %c0_i32_1 = arith.constant 0 : i32
    %c0_i32_2 = arith.constant 0 : i32
    return %c0_i32, %c0_i32_0, %c0_i32_1 : i32, i32, i32
  }
  func.func @transform_4(%arg0: i32, %arg1: i32) -> (i32, i32, i32, i32) {
    %c0_i32 = arith.constant 0 : i32
    %c0_i32_0 = arith.constant 0 : i32
    %c0_i32_1 = arith.constant 0 : i32
    return %arg0, %arg1, %c0_i32, %c0_i32_0 : i32, i32, i32, i32
  }
}

</mosaic_0001>

<llo_original>
// kernel: downconv.1
$region0: #{downconv.1}
  #allocation0 [shape = 'u32[]', space=smem, size = 0x4, offset = 0x4, fixed_abs, tag = 'smem constant byte address 0x4 - core index']
  #allocation1 [shape = 'u32[144,128]{1,0:T(1,128)}', space=vmem, size = 0x12000, scoped, tag = 'internal scratch']
  %s0 = inlined_call_operand.vmem [shape: bf16[2,17,16,256], index: 0, kind: input, shape index: {}, may-alias: {0,1}]
  %s1 = inlined_call_operand.vmem [shape: bf16[2,17,16,256], index: 1, kind: input, shape index: {}, may-alias: {0,1}]
  %s2 = inlined_call_operand.vmem [shape: bf16[256,128], index: 2, kind: input, shape index: {}]
  %s3 = inlined_call_operand.vmem [shape: f32[1,1,32], index: 3, kind: input, shape index: {}]
  %s4 = inlined_call_operand.vmem [shape: f32[2,16,15,32], index: 4, kind: output, shape index: {}]
  %s5 = sld [smem:[#allocation0]]
  $region49: #{downconv.1} parent=0
    _
  %s7 = ssub.s32 1, %s5
  %s8 = scalar_select 0, %s7, %s5
  loop: start=0, step=1, limit=10
  $region2: #{downconv.1} parent=0 // loop_pre_header
    _
  $region3: #{downconv.1} parent=0 // loop_header
    %s10 = sphi 0, %s14
    %p11 = scmp.ge.s32.totalorder %s10, 10
    %s17 = sphi 0, %s29
    %s18 = sphi 0, %s25
    %s19 = sphi 0, %s17
    %s20 = sphi 0, %s18
    %s21 = sphi 0, %s19
    %s22 = sphi 0, %s20
    %s34 = sphi 0, %s36
    %s37 = sphi 0, %s34
    %s38 = sphi 0, %s37
    %s54 = sphi 0, %s38
    %s66 = sphi 0, %s68
    %s69 = sphi 0, %s66
    %s70 = sphi 0, %s69
    %s86 = sphi 0, %s70
    %s90 = sphi 0, %s90
    %s92 = sphi 0, %s90
    %s93 = sphi 0, %s92
    %s107 = sphi 0, %s93
    %s111 = sphi 0, %s111
    %s113 = sphi 0, %s111
    %s114 = sphi 0, %s113
    %s128 = sphi 0, %s114
    %s136 = sphi 0, %s138
    %s139 = sphi 0, %s136
    %s140 = sphi 0, %s139
    %s156 = sphi 0, %s140
  $region4: #{downconv.1} parent=0 // loop_header_branch
    %13 = sbr.rel (%p11) target = $region8
  $region5: #{downconv.1} parent=0 // loop_body
    %s15 = ssub.s32 %s10, 1
    %s16 = ssub.s32 %s10, 2
    %s23 = sadd.s32 1, %s18
    %p24 = scmp.ge.s32.totalorder %s23, 4
    %s25 = scalar_select %p24, 0, %s23
    %s26 = sadd.s32 1, %s17
    %s27 = scalar_select %p24, %s26, %s17
    %p28 = scmp.ge.s32.totalorder %s27, 2
    %s29 = scalar_select %p28, 0, %s27
    %s30 = ssub.s32 %s17, %s29
    %s31 = ssub.s32 %s18, %s25
    %s32 = sor.u32 %s30, %s31
    %p33 = scmp.eq.s32.totalorder %s32, 0
    %s35 = sadd.s32 %s34, 1
    %s36 = scalar_select %p33, %s34, %s35
    %p39 = pneg %p33
    %p40 = scmp.eq.s32.totalorder %s10, 7
    %p41 = por %p39, %p40
    %p42 = scmp.ne.s32.totalorder %s34, %s37
    %p43 = scmp.eq.s32.totalorder %s10, 0
    %p44 = por %p42, %p43
    %p45 = scmp.ne.s32.totalorder %s34, %s37
    %p46 = scmp.eq.s32.totalorder %s15, 7
    %p47 = por %p45, %p46
    %p48 = scmp.ne.s32.totalorder %s37, %s38
    %p49 = scmp.eq.s32.totalorder %s15, 0
    %p50 = por %p48, %p49
    %p51 = scmp.ne.s32.totalorder %s37, %s38
    %p52 = scmp.eq.s32.totalorder %s16, 7
    %p53 = por %p51, %p52
    %p55 = scmp.ne.s32.totalorder %s38, %s54
    %p56 = scmp.eq.s32.totalorder %s16, 0
    %p57 = por %p55, %p56
    %s58 = sadd.s32 %s18, 1
    %s59 = smul.u32 %s58, 4
    %s60 = sadd.s32 %s25, 1
    %s61 = smul.u32 %s60, 4
    %s62 = ssub.s32 %s17, %s29
    %s63 = ssub.s32 %s59, %s61
    %s64 = sor.u32 %s62, %s63
    %p65 = scmp.eq.s32.totalorder %s64, 0
    %s67 = sadd.s32 %s66, 1
    %s68 = scalar_select %p65, %s66, %s67
    %p71 = pneg %p65
    %p72 = scmp.eq.s32.totalorder %s10, 7
    %p73 = por %p71, %p72
    %p74 = scmp.ne.s32.totalorder %s66, %s69
    %p75 = scmp.eq.s32.totalorder %s10, 0
    %p76 = por %p74, %p75
    %p77 = scmp.ne.s32.totalorder %s66, %s69
    %p78 = scmp.eq.s32.totalorder %s15, 7
    %p79 = por %p77, %p78
    %p80 = scmp.ne.s32.totalorder %s69, %s70
    %p81 = scmp.eq.s32.totalorder %s15, 0
    %p82 = por %p80, %p81
    %p83 = scmp.ne.s32.totalorder %s69, %s70
    %p84 = scmp.eq.s32.totalorder %s16, 7
    %p85 = por %p83, %p84
    %p87 = scmp.ne.s32.totalorder %s70, %s86
    %p88 = scmp.eq.s32.totalorder %s16, 0
    %p89 = por %p87, %p88
    %s91 = sadd.s32 %s90, 1
    %p94 = scmp.eq.s32.totalorder %s10, 7
    %p95 = scmp.ne.s32.totalorder %s90, %s92
    %p96 = scmp.eq.s32.totalorder %s10, 0
    %p97 = por %p95, %p96
    %p98 = scmp.ne.s32.totalorder %s90, %s92
    %p99 = scmp.eq.s32.totalorder %s15, 7
    %p100 = por %p98, %p99
    %p101 = scmp.ne.s32.totalorder %s92, %s93
    %p102 = scmp.eq.s32.totalorder %s15, 0
    %p103 = por %p101, %p102
    %p104 = scmp.ne.s32.totalorder %s92, %s93
    %p105 = scmp.eq.s32.totalorder %s16, 7
    %p106 = por %p104, %p105
    %p108 = scmp.ne.s32.totalorder %s93, %s107
    %p109 = scmp.eq.s32.totalorder %s16, 0
    %p110 = por %p108, %p109
    %s112 = sadd.s32 %s111, 1
    %p115 = scmp.eq.s32.totalorder %s10, 7
    %p116 = scmp.ne.s32.totalorder %s111, %s113
    %p117 = scmp.eq.s32.totalorder %s10, 0
    %p118 = por %p116, %p117
    %p119 = scmp.ne.s32.totalorder %s111, %s113
    %p120 = scmp.eq.s32.totalorder %s15, 7
    %p121 = por %p119, %p120
    %p122 = scmp.ne.s32.totalorder %s113, %s114
    %p123 = scmp.eq.s32.totalorder %s15, 0
    %p124 = por %p122, %p123
    %p125 = scmp.ne.s32.totalorder %s113, %s114
    %p126 = scmp.eq.s32.totalorder %s16, 7
    %p127 = por %p125, %p126
    %p129 = scmp.ne.s32.totalorder %s114, %s128
    %p130 = scmp.eq.s32.totalorder %s16, 0
    %p131 = por %p129, %p130
    %s132 = ssub.s32 %s17, %s29
    %s133 = ssub.s32 %s18, %s25
    %s134 = sor.u32 %s132, %s133
    %p135 = scmp.eq.s32.totalorder %s134, 0
    %s137 = sadd.s32 %s136, 1
    %s138 = scalar_select %p135, %s136, %s137
    %p141 = pneg %p135
    %p142 = scmp.eq.s32.totalorder %s10, 7
    %p143 = por %p141, %p142
    %p144 = scmp.ne.s32.totalorder %s136, %s139
    %p145 = scmp.eq.s32.totalorder %s10, 0
    %p146 = por %p144, %p145
    %p147 = scmp.ne.s32.totalorder %s136, %s139
    %p148 = scmp.eq.s32.totalorder %s15, 7
    %p149 = por %p147, %p148
    %p150 = scmp.ne.s32.totalorder %s139, %s140
    %p151 = scmp.eq.s32.totalorder %s15, 0
    %p152 = por %p150, %p151
    %p153 = scmp.ne.s32.totalorder %s139, %s140
    %p154 = scmp.eq.s32.totalorder %s16, 7
    %p155 = por %p153, %p154
    %p157 = scmp.ne.s32.totalorder %s140, %s156
    %p158 = scmp.eq.s32.totalorder %s16, 0
    %p159 = por %p157, %p158
    %p160 = scmp.le.s32.totalorder 1, %s10
    %p161 = scmp.lt.s32.totalorder %s10, 9
    %p162 = pnand %p160, %p161
    %p163 = pneg %p162
    // Predicated region
    $region9: #{downconv.1} parent=5 // pred_check
      _
    $region10: #{downconv.1} parent=5 // pred_check_branch
      %165 = sbr.rel (%p162) target = $region12
    $region11: #{downconv.1} parent=5 // pred_region
      %s166 = ssub.s32 %s10, 1
      // Predicated region
      $region13: #{downconv.1} parent=11 // pred_check
        %p167 = pneg %p103
      $region14: #{downconv.1} parent=11 // pred_check_branch
        %169 = sbr.rel (%p167) target = $region16
      $region15: #{downconv.1} parent=11 // pred_region
        _
      $region16: #{downconv.1} parent=11 // pred_fallthru
        _
      // Predicated region
      $region17: #{downconv.1} parent=11 // pred_check
        %p170 = pneg %p124
      $region18: #{downconv.1} parent=11 // pred_check_branch
        %172 = sbr.rel (%p170) target = $region20
      $region19: #{downconv.1} parent=11 // pred_region
        _
      $region20: #{downconv.1} parent=11 // pred_fallthru
        _
    $region12: #{downconv.1} parent=5 // pred_fallthru
      _
    %p173 = scmp.lt.s32.totalorder %s10, 8
    // Predicated region
    $region21: #{downconv.1} parent=5 // pred_check
      %p174 = pneg %p173
    $region22: #{downconv.1} parent=5 // pred_check_branch
      %176 = sbr.rel (%p174) target = $region24
    $region23: #{downconv.1} parent=5 // pred_region
      // Predicated region
      $region25: #{downconv.1} parent=23 // pred_check
        %p177 = pneg %p44
      $region26: #{downconv.1} parent=23 // pred_check_branch
        %179 = sbr.rel (%p177) target = $region28
      $region27: #{downconv.1} parent=23 // pred_region
        %s180 = smul.u32 4, %s18
        %s181 = ssub.s32 17, %s180
        %p182 = scmp.lt.s32.totalorder %s181, 4
        %s183 = scalar_select %p182, %s181, 4
        %s184 = smul.u32 64, %s183
        %s185 = smul.u32 %s184, 2
        %s186 = smul.u32 %s185, 2
        %p187 = scmp.lt.s32.totalorder %s17, 1
        %s188 = scalar_select %p187, %s17, 1
        %p189 = scmp.lt.s32.totalorder %s180, 16
        %s190 = scalar_select %p189, %s180, 16
        %s191 = smul.addr %s190, 4
        %s192 = smul.addr %s188, 68
        %s193 = sadd.s32 %s191, %s192
        %s194 = smul.addr %s193, 4
        %s195 = scalar_lea.vmem %s0, %s194
        %s196 = smul.u32 4, %s18
        %s197 = ssub.s32 17, %s196
        %p198 = scmp.lt.s32.totalorder %s197, 4
        %s199 = scalar_select %p198, %s197, 4
        %s200 = smul.u32 64, %s199
        %s201 = smul.u32 %s200, 2
        %s202 = smul.u32 %s201, 2
      $region28: #{downconv.1} parent=23 // pred_fallthru
        _
      // Predicated region
      $region29: #{downconv.1} parent=23 // pred_check
        %p203 = pneg %p76
      $region30: #{downconv.1} parent=23 // pred_check_branch
        %205 = sbr.rel (%p203) target = $region32
      $region31: #{downconv.1} parent=23 // pred_region
        %s206 = sadd.s32 %s18, 1
        %s207 = smul.u32 %s206, 4
        %p208 = scmp.lt.s32.totalorder %s17, 1
        %s209 = scalar_select %p208, %s17, 1
        %p210 = scmp.lt.s32.totalorder %s207, 16
        %s211 = scalar_select %p210, %s207, 16
        %s212 = smul.addr %s211, 4
        %s213 = smul.addr %s209, 68
        %s214 = sadd.s32 %s212, %s213
        %s215 = smul.addr %s214, 4
        %s216 = scalar_lea.vmem %s1, %s215
        %s217 = sadd.s32 %s18, 1
        %s218 = smul.u32 %s217, 4
      $region32: #{downconv.1} parent=23 // pred_fallthru
        _
    $region24: #{downconv.1} parent=5 // pred_fallthru
      _
    %p219 = scmp.le.s32.totalorder 1, %s10
    %p220 = scmp.lt.s32.totalorder %s10, 9
    %p221 = pnand %p219, %p220
    %p222 = pneg %p221
    // Predicated region
    $region33: #{downconv.1} parent=5 // pred_check
      _
    $region34: #{downconv.1} parent=5 // pred_check_branch
      %224 = sbr.rel (%p221) target = $region36
    $region35: #{downconv.1} parent=5 // pred_region
      %s225 = ssub.s32 %s10, 1
      %s226 = smul.u32 4, %s20
      %s227 = ssub.s32 17, %s226
      %p228 = scmp.lt.s32.totalorder %s227, 4
      %s229 = scalar_select %p228, %s227, 4
      %s230 = smul.u32 64, %s229
      %s231 = smul.u32 %s230, 2
      %s232 = smul.u32 %s231, 2
      %p233 = scmp.lt.s32.totalorder %s19, 1
      %s234 = scalar_select %p233, %s19, 1
      %p235 = scmp.lt.s32.totalorder %s226, 16
      %s236 = scalar_select %p235, %s226, 16
      %s237 = smul.addr %s236, 4
      %s238 = smul.addr %s234, 68
      %s239 = sadd.s32 %s237, %s238
      %s240 = smul.addr %s239, 4
      %s241 = scalar_lea.vmem %s0, %s240
      %p242 = pneg %p50
      %p243 = pneg %p47
      %s244 = sadd.s32 %s20, 1
      %s245 = smul.u32 %s244, 4
      %p246 = scmp.lt.s32.totalorder %s19, 1
      %s247 = scalar_select %p246, %s19, 1
      %p248 = scmp.lt.s32.totalorder %s245, 16
      %s249 = scalar_select %p248, %s245, 16
      %s250 = smul.addr %s249, 4
      %s251 = smul.addr %s247, 68
      %s252 = sadd.s32 %s250, %s251
      %s253 = smul.addr %s252, 4
      %s254 = scalar_lea.vmem %s1, %s253
      %p255 = pneg %p82
      %p256 = pneg %p79
      %p257 = pneg %p103
      %p258 = pneg %p100
      %p259 = pneg %p124
      %p260 = pneg %p121
      %p261 = pneg %p152
      %p262 = pneg %p149
      %s263 = smul.u32 4, %s20
      %p264 = scmp.lt.s32.totalorder %s19, 1
      %s265 = scalar_select %p264, %s19, 1
      %p266 = scmp.lt.s32.totalorder %s263, 15
      %s267 = scalar_select %p266, %s263, 15
      %s268 = smul.addr %s267, 2
      %s269 = smul.addr %s265, 32
      %s270 = sadd.s32 %s268, %s269
      %s271 = smul.addr %s270, 8
      %s272 = scalar_lea.vmem %s4, %s271
      %s273 = smul.u32 4, %s20
      %s274 = ssub.s32 17, %s273
      %p275 = scmp.lt.s32.totalorder %s274, 4
      %s276 = scalar_select %p275, %s274, 4
      %s277 = smul.u32 64, %s276
      %s278 = smul.u32 %s277, 2
      %s279 = smul.u32 %s278, 2
      %p280 = scmp.lt.s32.totalorder %s19, 1
      %s281 = scalar_select %p280, %s19, 1
      %p282 = scmp.lt.s32.totalorder %s273, 16
      %s283 = scalar_select %p282, %s273, 16
      %s284 = smul.addr %s283, 4
      %s285 = smul.addr %s281, 68
      %s286 = sadd.s32 %s284, %s285
      %s287 = smul.addr %s286, 4
      %s288 = scalar_lea.vmem %s0, %s287
      %s289 = smul.u32 4, %s20
      %s290 = ssub.s32 17, %s289
      %p291 = scmp.lt.s32.totalorder %s290, 4
      %s292 = scalar_select %p291, %s290, 4
      %s293 = smul.u32 64, %s292
      %s294 = smul.u32 %s293, 2
      %s295 = smul.u32 %s294, 2
      %s296 = sadd.s32 %s20, 1
      %s297 = smul.u32 %s296, 4
      %p298 = scmp.lt.s32.totalorder %s19, 1
      %s299 = scalar_select %p298, %s19, 1
      %p300 = scmp.lt.s32.totalorder %s297, 16
      %s301 = scalar_select %p300, %s297, 16
      %s302 = smul.addr %s301, 4
      %s303 = smul.addr %s299, 68
      %s304 = sadd.s32 %s302, %s303
      %s305 = smul.addr %s304, 4
      %s306 = scalar_lea.vmem %s1, %s305
      %s307 = sadd.s32 %s20, 1
      %s308 = smul.u32 %s307, 4
      %s309 = smul.u32 4, %s20
      %p310 = scmp.lt.s32.totalorder %s19, 1
      %s311 = scalar_select %p310, %s19, 1
      %p312 = scmp.lt.s32.totalorder %s309, 15
      %s313 = scalar_select %p312, %s309, 15
      %s314 = smul.addr %s313, 2
      %s315 = smul.addr %s311, 32
      %s316 = sadd.s32 %s314, %s315
      %s317 = smul.addr %s316, 8
      %s318 = scalar_lea.vmem %s4, %s317
      %s319 = smul.u32 4, %s20
      %v321 = vld [vmem:[%s288] sm:$0xff]
      %v322 = vld [vmem:[%s288 + $0x8] sm:$0xff]
      %v323 = vld [vmem:[%s288 + $0x10] sm:$0xff]
      %v324 = vld [vmem:[%s288 + $0x18] sm:$0xff]
      %v325 = vld [vmem:[%s288 + $0x20] sm:$0xff]
      %v326 = vld [vmem:[%s288 + $0x28] sm:$0xff]
      %v327 = vld [vmem:[%s288 + $0x30] sm:$0xff]
      %v328 = vld [vmem:[%s288 + $0x38] sm:$0xff]
      %v329 = vld [vmem:[%s306] sm:$0xff]
      %v330 = vld [vmem:[%s306 + $0x8] sm:$0xff]
      %v331 = vld [vmem:[%s2] sm:$0xf]
      %v332 = vld [vmem:[%s2 + $0x4] sm:$0xf]
      %v333 = vld [vmem:[%s2 + $0x8] sm:$0xf]
      %v334 = vld [vmem:[%s2 + $0xc] sm:$0xf]
      %v335 = vld [vmem:[%s2 + $0x10] sm:$0xf]
      %v336 = vld [vmem:[%s2 + $0x14] sm:$0xf]
      %v337 = vld [vmem:[%s2 + $0x18] sm:$0xf]
      %v338 = vld [vmem:[%s2 + $0x1c] sm:$0xf]
      %v339 = vld [vmem:[%s2 + $0x20] sm:$0xf]
      %v340 = vld [vmem:[%s2 + $0x24] sm:$0xf]
      %v341 = vld [vmem:[%s2 + $0x28] sm:$0xf]
      %v342 = vld [vmem:[%s2 + $0x2c] sm:$0xf]
      %v343 = vld [vmem:[%s2 + $0x30] sm:$0xf]
      %v344 = vld [vmem:[%s2 + $0x34] sm:$0xf]
      %v345 = vld [vmem:[%s2 + $0x38] sm:$0xf]
      %v346 = vld [vmem:[%s2 + $0x3c] sm:$0xf]
      %v347 = vld [vmem:[%s2 + $0x40] sm:$0xf]
      %v348 = vld [vmem:[%s2 + $0x44] sm:$0xf]
      %v349 = vld [vmem:[%s2 + $0x48] sm:$0xf]
      %v350 = vld [vmem:[%s2 + $0x4c] sm:$0xf]
      %v351 = vld [vmem:[%s2 + $0x50] sm:$0xf]
      %v352 = vld [vmem:[%s2 + $0x54] sm:$0xf]
      %v353 = vld [vmem:[%s2 + $0x58] sm:$0xf]
      %v354 = vld [vmem:[%s2 + $0x5c] sm:$0xf]
      %v355 = vld [vmem:[%s2 + $0x60] sm:$0xf]
      %v356 = vld [vmem:[%s2 + $0x64] sm:$0xf]
      %v357 = vld [vmem:[%s2 + $0x68] sm:$0xf]
      %v358 = vld [vmem:[%s2 + $0x6c] sm:$0xf]
      %v359 = vld [vmem:[%s2 + $0x70] sm:$0xf]
      %v360 = vld [vmem:[%s2 + $0x74] sm:$0xf]
      %v361 = vld [vmem:[%s2 + $0x78] sm:$0xf]
      %v362 = vld [vmem:[%s2 + $0x7c] sm:$0xf]
      %v371 = vunpack.c.l.b16 %v321
      %v372 = vunpack.c.h.b16 %v321
      %v373 = vunpack.c.l.b16 %v322
      %v374 = vunpack.c.h.b16 %v322
      %v375 = vunpack.c.l.b16 %v323
      %v376 = vunpack.c.h.b16 %v323
      %v377 = vunpack.c.l.b16 %v324
      %v378 = vunpack.c.h.b16 %v324
      %v379 = vunpack.c.l.b16 %v325
      %v380 = vunpack.c.h.b16 %v325
      %v381 = vunpack.c.l.b16 %v326
      %v382 = vunpack.c.h.b16 %v326
      %v383 = vunpack.c.l.b16 %v327
      %v384 = vunpack.c.h.b16 %v327
      %v385 = vunpack.c.l.b16 %v328
      %v386 = vunpack.c.h.b16 %v328
      %v387 = vpack.c.b16 %v373, %v371
      %v388 = vpack.c.b16 %v374, %v372
      %v389 = vpack.c.b16 %v377, %v375
      %v390 = vpack.c.b16 %v378, %v376
      %v391 = vpack.c.b16 %v381, %v379
      %v392 = vpack.c.b16 %v382, %v380
      %v393 = vpack.c.b16 %v385, %v383
      %v394 = vpack.c.b16 %v386, %v384
      %v435 = vunpack.c.l.b16 %v331
      %v436 = vunpack.c.l.b16 %v332
      %v437 = vunpack.c.l.b16 %v333
      %v438 = vunpack.c.l.b16 %v334
      %v439 = vunpack.c.l.b16 %v335
      %v440 = vunpack.c.l.b16 %v336
      %v441 = vunpack.c.l.b16 %v337
      %v442 = vunpack.c.l.b16 %v338
      %v443 = vunpack.c.l.b16 %v339
      %v444 = vunpack.c.l.b16 %v340
      %v445 = vunpack.c.l.b16 %v341
      %v446 = vunpack.c.l.b16 %v342
      %v447 = vunpack.c.l.b16 %v343
      %v448 = vunpack.c.l.b16 %v344
      %v449 = vunpack.c.l.b16 %v345
      %v450 = vunpack.c.l.b16 %v346
      %v451 = vunpack.c.l.b16 %v347
      %v452 = vunpack.c.l.b16 %v348
      %v453 = vunpack.c.l.b16 %v349
      %v454 = vunpack.c.l.b16 %v350
      %v455 = vunpack.c.l.b16 %v351
      %v456 = vunpack.c.l.b16 %v352
      %v457 = vunpack.c.l.b16 %v353
      %v458 = vunpack.c.l.b16 %v354
      %v459 = vunpack.c.l.b16 %v355
      %v460 = vunpack.c.l.b16 %v356
      %v461 = vunpack.c.l.b16 %v357
      %v462 = vunpack.c.l.b16 %v358
      %v463 = vunpack.c.l.b16 %v359
      %v464 = vunpack.c.l.b16 %v360
      %v465 = vunpack.c.l.b16 %v361
      %v466 = vunpack.c.l.b16 %v362
      %v467 = vpack.c.b16 %v436, %v435
      %v468 = vpack.c.b16 %v438, %v437
      %v469 = vpack.c.b16 %v440, %v439
      %v470 = vpack.c.b16 %v442, %v441
      %v471 = vpack.c.b16 %v444, %v443
      %v472 = vpack.c.b16 %v446, %v445
      %v473 = vpack.c.b16 %v448, %v447
      %v474 = vpack.c.b16 %v450, %v449
      %v475 = vpack.c.b16 %v452, %v451
      %v476 = vpack.c.b16 %v454, %v453
      %v477 = vpack.c.b16 %v456, %v455
      %v478 = vpack.c.b16 %v458, %v457
      %v479 = vpack.c.b16 %v460, %v459
      %v480 = vpack.c.b16 %v462, %v461
      %v481 = vpack.c.b16 %v464, %v463
      %v482 = vpack.c.b16 %v466, %v465
      %499 = vmatprep.subr.bf16.mxu0 0
      %500 = vmatpush1.bf16.msra.mxu0 %v467
      %501 = vmatprep.subr.bf16.mxu0 0
      %502 = vmatpush1.bf16.msra.mxu0 %v468
      %503 = vmatprep.subr.bf16.mxu0 0
      %504 = vmatpush1.bf16.msra.mxu0 %v469
      %505 = vmatprep.subr.bf16.mxu0 0
      %506 = vmatpush1.bf16.msra.mxu0 %v470
      %507 = vmatprep.subr.bf16.mxu0 0
      %508 = vmatpush1.bf16.msra.mxu0 %v471
      %509 = vmatprep.subr.bf16.mxu0 0
      %510 = vmatpush1.bf16.msra.mxu0 %v472
      %511 = vmatprep.subr.bf16.mxu0 0
      %512 = vmatpush1.bf16.msra.mxu0 %v473
      %513 = vmatprep.subr.bf16.mxu0 0
      %514 = vmatpush1.bf16.msra.mxu0 %v474
      %515 = vmatprep.subr.bf16.mxu0 0
      %516 = vmatpush1.bf16.msra.mxu0 %v475
      %517 = vmatprep.subr.bf16.mxu0 0
      %518 = vmatpush1.bf16.msra.mxu0 %v476
      %519 = vmatprep.subr.bf16.mxu0 0
      %520 = vmatpush1.bf16.msra.mxu0 %v477
      %521 = vmatprep.subr.bf16.mxu0 0
      %522 = vmatpush1.bf16.msra.mxu0 %v478
      %523 = vmatprep.subr.bf16.mxu0 0
      %524 = vmatpush1.bf16.msra.mxu0 %v479
      %525 = vmatprep.subr.bf16.mxu0 0
      %526 = vmatpush1.bf16.msra.mxu0 %v480
      %527 = vmatprep.subr.bf16.mxu0 0
      %528 = vmatpush1.bf16.msra.mxu0 %v481
      %529 = vmatprep.subr.bf16.mxu0 0
      %530 = vmatpush1.bf16.msra.mxu0 %v482
      %531 = vmatprep.mubr.bf16.mxu0 %v388
      %532 = vmatmul.mubr.bf16.gmra.mrb[0].mxu0 %v387
      %v533 = vpop.f32.mrb[0].mxu0
      %v534 = vadd.f32 0.0, %v533
      %v535 = vpop.f32.mrb[0].mxu0
      %v536 = vpop.f32.mrb[0].mxu0
      %v537 = vadd.f32 0.0, %v536
      %v538 = vpop.f32.mrb[0].mxu0
      %539 = vmatprep.mubr.bf16.mxu0 %v390
      %540 = vmatmul.mubr.bf16.gmra.mrb[0].mxu0 %v389
      %v541 = vpop.f32.mrb[0].mxu0
      %v542 = vadd.f32 0.0, %v541
      %v543 = vpop.f32.mrb[0].mxu0
      %v544 = vpop.f32.mrb[0].mxu0
      %v545 = vadd.f32 0.0, %v544
      %v546 = vpop.f32.mrb[0].mxu0
      %547 = vmatprep.mubr.bf16.mxu0 %v392
      %548 = vmatmul.mubr.bf16.gmra.mrb[0].mxu0 %v391
      %v549 = vpop.f32.mrb[0].mxu0
      %v550 = vadd.f32 0.0, %v549
      %v551 = vpop.f32.mrb[0].mxu0
      %v552 = vpop.f32.mrb[0].mxu0
      %v553 = vadd.f32 0.0, %v552
      %v554 = vpop.f32.mrb[0].mxu0
      %555 = vmatprep.mubr.bf16.mxu0 %v394
      %556 = vmatmul.mubr.bf16.gmra.mrb[0].mxu0 %v393
      %v557 = vpop.f32.mrb[0].mxu0
      %v558 = vadd.f32 0.0, %v557
      %v559 = vpop.f32.mrb[0].mxu0
      %v560 = vpop.f32.mrb[0].mxu0
      %v561 = vadd.f32 0.0, %v560
      %v562 = vpop.f32.mrb[0].mxu0
      %563 = vdwg.mxu0
      %v566 = vunpack.c.l.b16 %v329
      %v567 = vunpack.c.h.b16 %v329
      %v568 = vunpack.c.l.b16 %v330
      %v569 = vunpack.c.h.b16 %v330
      %v570 = vpack.c.b16 %v568, %v566
      %v571 = vpack.c.b16 %v569, %v567
      %574 = vmatprep.subr.bf16.mxu0 0
      %575 = vmatpush1.bf16.msra.mxu0 %v467
      %576 = vmatprep.subr.bf16.mxu0 0
      %577 = vmatpush1.bf16.msra.mxu0 %v468
      %578 = vmatprep.subr.bf16.mxu0 0
      %579 = vmatpush1.bf16.msra.mxu0 %v469
      %580 = vmatprep.subr.bf16.mxu0 0
      %581 = vmatpush1.bf16.msra.mxu0 %v470
      %582 = vmatprep.subr.bf16.mxu0 0
      %583 = vmatpush1.bf16.msra.mxu0 %v471
      %584 = vmatprep.subr.bf16.mxu0 0
      %585 = vmatpush1.bf16.msra.mxu0 %v472
      %586 = vmatprep.subr.bf16.mxu0 0
      %587 = vmatpush1.bf16.msra.mxu0 %v473
      %588 = vmatprep.subr.bf16.mxu0 0
      %589 = vmatpush1.bf16.msra.mxu0 %v474
      %590 = vmatprep.subr.bf16.mxu0 0
      %591 = vmatpush1.bf16.msra.mxu0 %v475
      %592 = vmatprep.subr.bf16.mxu0 0
      %593 = vmatpush1.bf16.msra.mxu0 %v476
      %594 = vmatprep.subr.bf16.mxu0 0
      %595 = vmatpush1.bf16.msra.mxu0 %v477
      %596 = vmatprep.subr.bf16.mxu0 0
      %597 = vmatpush1.bf16.msra.mxu0 %v478
      %598 = vmatprep.subr.bf16.mxu0 0
      %599 = vmatpush1.bf16.msra.mxu0 %v479
      %600 = vmatprep.subr.bf16.mxu0 0
      %601 = vmatpush1.bf16.msra.mxu0 %v480
      %602 = vmatprep.subr.bf16.mxu0 0
      %603 = vmatpush1.bf16.msra.mxu0 %v481
      %604 = vmatprep.subr.bf16.mxu0 0
      %605 = vmatpush1.bf16.msra.mxu0 %v482
      %606 = vmatprep.mubr.bf16.mxu0 %v571
      %607 = vmatmul.mubr.bf16.gmra.mrb[0].mxu0 %v570
      %v608 = vpop.f32.mrb[0].mxu0
      %v609 = vadd.f32 0.0, %v608
      %v610 = vpop.f32.mrb[0].mxu0
      %v611 = vpop.f32.mrb[0].mxu0
      %v612 = vadd.f32 0.0, %v611
      %v613 = vpop.f32.mrb[0].mxu0
      %614 = vdwg.mxu0
      %vm623 = vcmask 1046528
      %v624 = vrot.slane %v534, 1
      %v625 = vrot.slane %v537, 1
      %v626 = vsel %vm623, %v624, %v625
      %v627 = vrot.slane %v542, 1
      %v628 = vrot.slane %v545, 1
      %v629 = vsel %vm623, %v627, %v628
      %v630 = vrot.slane %v550, 1
      %v631 = vrot.slane %v553, 1
      %v632 = vsel %vm623, %v630, %v631
      %v633 = vrot.slane %v558, 1
      %v634 = vrot.slane %v561, 1
      %v635 = vsel %vm623, %v633, %v634
      %636 = vrot.lane.b32.xlu0 %v626, 96
      %v637 = vpop.permute.xlu0 %636
      %638 = vrot.lane.b32.xlu0 %v625, 96
      %v639 = vpop.permute.xlu0 %638
      %640 = vrot.lane.b32.xlu0 %v629, 96
      %v641 = vpop.permute.xlu0 %640
      %642 = vrot.lane.b32.xlu0 %v628, 96
      %v643 = vpop.permute.xlu0 %642
      %644 = vrot.lane.b32.xlu0 %v632, 96
      %v645 = vpop.permute.xlu0 %644
      %646 = vrot.lane.b32.xlu0 %v631, 96
      %v647 = vpop.permute.xlu0 %646
      %648 = vrot.lane.b32.xlu0 %v635, 96
      %v649 = vpop.permute.xlu0 %648
      %650 = vrot.lane.b32.xlu0 %v634, 96
      %v651 = vpop.permute.xlu0 %650
      %v660 = vadd.f32 %v534, %v637
      %v661 = vadd.f32 %v537, %v639
      %v662 = vadd.f32 %v542, %v641
      %v663 = vadd.f32 %v545, %v643
      %v664 = vadd.f32 %v550, %v645
      %v665 = vadd.f32 %v553, %v647
      %v666 = vadd.f32 %v558, %v649
      %v667 = vadd.f32 %v561, %v651
      %670 = vrot.lane.b32.xlu0 %v542, 64
      %v671 = vpop.permute.xlu0 %670
      %672 = vrot.lane.b32.xlu0 %v545, 64
      %v673 = vpop.permute.xlu0 %672
      %674 = vrot.lane.b32.xlu0 %v550, 64
      %v675 = vpop.permute.xlu0 %674
      %676 = vrot.lane.b32.xlu0 %v553, 64
      %v677 = vpop.permute.xlu0 %676
      %678 = vrot.lane.b32.xlu0 %v558, 64
      %v679 = vpop.permute.xlu0 %678
      %680 = vrot.lane.b32.xlu0 %v561, 64
      %v681 = vpop.permute.xlu0 %680
      %682 = vrot.lane.b32.xlu0 %v609, 64
      %v683 = vpop.permute.xlu0 %682
      %684 = vrot.lane.b32.xlu0 %v612, 64
      %v685 = vpop.permute.xlu0 %684
      %v694 = vadd.f32 %v660, %v671
      %v695 = vadd.f32 %v661, %v673
      %v696 = vadd.f32 %v662, %v675
      %v697 = vadd.f32 %v663, %v677
      %v698 = vadd.f32 %v664, %v679
      %v699 = vadd.f32 %v665, %v681
      %v700 = vadd.f32 %v666, %v683
      %v701 = vadd.f32 %v667, %v685
      %v702 = vrot.slane %v609, 1
      %v703 = vrot.slane %v612, 1
      %v704 = vsel %vm623, %v702, %v703
      %705 = vrot.lane.b32.xlu0 %v629, 32
      %v706 = vpop.permute.xlu0 %705
      %707 = vrot.lane.b32.xlu0 %v628, 32
      %v708 = vpop.permute.xlu0 %707
      %709 = vrot.lane.b32.xlu0 %v632, 32
      %v710 = vpop.permute.xlu0 %709
      %711 = vrot.lane.b32.xlu0 %v631, 32
      %v712 = vpop.permute.xlu0 %711
      %713 = vrot.lane.b32.xlu0 %v635, 32
      %v714 = vpop.permute.xlu0 %713
      %715 = vrot.lane.b32.xlu0 %v634, 32
      %v716 = vpop.permute.xlu0 %715
      %717 = vrot.lane.b32.xlu0 %v704, 32
      %v718 = vpop.permute.xlu0 %717
      %719 = vrot.lane.b32.xlu0 %v703, 32
      %v720 = vpop.permute.xlu0 %719
      %v729 = vadd.f32 %v694, %v706
      %v730 = vadd.f32 %v695, %v708
      %v731 = vadd.f32 %v696, %v710
      %v732 = vadd.f32 %v697, %v712
      %v733 = vadd.f32 %v698, %v714
      %v734 = vadd.f32 %v699, %v716
      %v735 = vadd.f32 %v700, %v718
      %v736 = vadd.f32 %v701, %v720
      %v737 = vld [vmem:[%s3] sm:$0x1]
      %v739 = vlaneseq
      %v740 = vshrl.u32 %v739, 7
      %v741 = vsub.s32 0, %v740
      %v742 = vrot.slane %v737, %v741
      %v744 = vadd.f32 %v729, %v742
      %v745 = vadd.f32 %v730, %v742
      %v746 = vadd.f32 %v731, %v742
      %v747 = vadd.f32 %v732, %v742
      %v748 = vadd.f32 %v733, %v742
      %v749 = vadd.f32 %v734, %v742
      %v750 = vadd.f32 %v735, %v742
      %v751 = vadd.f32 %v736, %v742
      %vm752 = vcmask 261120
      %753 = vst.msk [vmem:[%s318] sm:$0xff] %vm752, %v744
      %vm754 = vcmask 260096
      %755 = vst.msk [vmem:[%s318 + $0x8] sm:$0x7f] %vm754, %v745
      %756 = vst.msk [vmem:[%s318 + $0x10] sm:$0xff] %vm752, %v746
      %757 = vst.msk [vmem:[%s318 + $0x18] sm:$0x7f] %vm754, %v747
      %758 = vst.msk [vmem:[%s318 + $0x20] sm:$0xff] %vm752, %v748
      %759 = vst.msk [vmem:[%s318 + $0x28] sm:$0x7f] %vm754, %v749
      %760 = vst.msk [vmem:[%s318 + $0x30] sm:$0xff] %vm752, %v750
      %761 = vst.msk [vmem:[%s318 + $0x38] sm:$0x7f] %vm754, %v751
      %s762 = smul.u32 4, %s20
      %p763 = scmp.lt.s32.totalorder %s19, 1
      %s764 = scalar_select %p763, %s19, 1
      %p765 = scmp.lt.s32.totalorder %s762, 15
      %s766 = scalar_select %p765, %s762, 15
      %s767 = smul.addr %s766, 2
      %s768 = smul.addr %s764, 32
      %s769 = sadd.s32 %s767, %s768
      %s770 = smul.addr %s769, 8
      %s771 = scalar_lea.vmem %s4, %s770
      // Predicated region
      $region37: #{downconv.1} parent=35 // pred_check
        %p772 = pneg %p149
      $region38: #{downconv.1} parent=35 // pred_check_branch
        %774 = sbr.rel (%p772) target = $region40
      $region39: #{downconv.1} parent=35 // pred_region
        %s775 = smul.u32 4, %s20
      $region40: #{downconv.1} parent=35 // pred_fallthru
        _
    $region36: #{downconv.1} parent=5 // pred_fallthru
      _
    %p776 = scmp.le.s32.totalorder 2, %s10
    // Predicated region
    $region41: #{downconv.1} parent=5 // pred_check
      %p777 = pneg %p776
    $region42: #{downconv.1} parent=5 // pred_check_branch
      %779 = sbr.rel (%p777) target = $region44
    $region43: #{downconv.1} parent=5 // pred_region
      %s780 = ssub.s32 %s10, 2
      // Predicated region
      $region45: #{downconv.1} parent=43 // pred_check
        %p781 = pneg %p155
      $region46: #{downconv.1} parent=43 // pred_check_branch
        %783 = sbr.rel (%p781) target = $region48
      $region47: #{downconv.1} parent=43 // pred_region
        %s784 = smul.u32 4, %s22
        %p785 = scmp.lt.s32.totalorder %s21, 1
        %s786 = scalar_select %p785, %s21, 1
        %p787 = scmp.lt.s32.totalorder %s784, 15
        %s788 = scalar_select %p787, %s784, 15
        %s789 = smul.addr %s788, 2
        %s790 = smul.addr %s786, 32
        %s791 = sadd.s32 %s789, %s790
        %s792 = smul.addr %s791, 8
        %s793 = scalar_lea.vmem %s4, %s792
      $region48: #{downconv.1} parent=43 // pred_fallthru
        _
    $region44: #{downconv.1} parent=5 // pred_fallthru
      _
  $region6: #{downconv.1} parent=0 // loop_footer
    %s14 = sadd.s32 1, %s10
  $region7: #{downconv.1} parent=0 // loop_footer_branch
    %9 = sbr.rel target = $region3
  $region8: #{downconv.1} parent=0 // loop_exit
    _

</llo_original>
